<compile_context>
chip_gen: v7x
topology: tpu7x:2x2x1
jax: 0.10.0
libtpu: 0.0.40
codegen_flags: <defaults>
</compile_context>

<pallas_src>
import functools

import jax
import jax.numpy as jnp
from jax.experimental import pallas as pl
from jax.experimental.pallas import tpu as pltpu


_BN_EPS = 1e-5


def _round_up(x, m):
    return (x + m - 1) // m * m


@functools.lru_cache(maxsize=1)
def _hw_config():
    """Per-generation tiling / VMEM knobs (safe fallback if the query fails)."""
    vmem_cap = 64 * 1024 * 1024
    try:
        vmem_cap = int(pltpu.get_tpu_info().vmem_capacity_bytes)
    except Exception:
        pass
    if vmem_cap >= 96 * 1024 * 1024:
        # v5e / v6e: 128 MiB physical VMEM -> bigger blocks, 64 MiB scoped limit.
        return {"vmem_limit": 64 * 1024 * 1024, "layer_rows": 8192,
                "pool_rows": 8192, "dist_tm": 512, "dist_tn": 2048}
    # v7x (64 MiB VMEM per TensorCore) or unknown: smaller blocks, lower limit.
    return {"vmem_limit": 48 * 1024 * 1024, "layer_rows": 4096,
            "pool_rows": 4096, "dist_tm": 256, "dist_tn": 1024}


# ---------------------------------------------------------------------------
# Pallas kernel 1: fused squared-distance + radius threshold -> ball indices
#   out[b, m, n] = n        if ||p1[b,m]-p2[b,n]||^2 <= radius^2 and n < N
#                  N (sent) otherwise
# Coordinates contract via 3 broadcast FMAs on the VPU (no sqrt; decisions
# are identical to the reference's sqrt(d) > radius for radius > 1e-3.5).
# ---------------------------------------------------------------------------
def _ball_idx_kernel(p1_ref, p2t_ref, o_ref, *, r2, n_valid, tn):
    p1 = p1_ref[...]       # (1, tm, 3)   M in sublanes
    p2t = p2t_ref[...]     # (1, 3, tn)   N in lanes
    a0 = p1[:, :, 0:1]; a1 = p1[:, :, 1:2]; a2 = p1[:, :, 2:3]      # (1, tm, 1)
    b0 = p2t[:, 0:1, :]; b1 = p2t[:, 1:2, :]; b2 = p2t[:, 2:3, :]   # (1, 1, tn)
    sq1 = a0 * a0 + a1 * a1 + a2 * a2                                # (1, tm, 1)
    sq2 = b0 * b0 + b1 * b1 + b2 * b2                                # (1, 1, tn)
    cross = a0 * b0 + a1 * b1 + a2 * b2                              # (1, tm, tn)
    d = sq1 + sq2 - 2.0 * cross
    col = (jax.lax.broadcasted_iota(jnp.int32, d.shape, 2)
           + pl.program_id(2) * tn)
    oob = (d > r2) | (col >= n_valid)        # padded N columns -> sentinel too
    o_ref[...] = jnp.where(oob, jnp.int32(n_valid), col)


def get_ball_indices_pallas(points1, points2, radius):
    """points1: (B, M, 3), points2: (B, N, 3) -> (B, M, N) int32 indices
    (value n if within `radius` of centroid, else sentinel N)."""
    cfg = _hw_config()
    B, M, _ = points1.shape
    _, N, _ = points2.shape
    r2 = float(radius) ** 2

    tm = min(cfg["dist_tm"], _round_up(M, 8))
    tn = min(cfg["dist_tn"], _round_up(N, 128))
    m_pad = _round_up(M, tm)
    n_pad = _round_up(N, tn)

    p1 = points1.astype(jnp.float32)
    if m_pad > M:
        p1 = jnp.pad(p1, ((0, 0), (0, m_pad - M), (0, 0)))
    p2t = jnp.transpose(points2.astype(jnp.float32), (0, 2, 1))       # (B, 3, N)
    if n_pad > N:
        p2t = jnp.pad(p2t, ((0, 0), (0, 0), (0, n_pad - N)))

    kern = functools.partial(_ball_idx_kernel, r2=r2, n_valid=N, tn=tn)
    out = pl.pallas_call(
        kern,
        out_shape=jax.ShapeDtypeStruct((B, m_pad, n_pad), jnp.int32),
        grid=(B, m_pad // tm, n_pad // tn),
        in_specs=[
            pl.BlockSpec((1, tm, 3), lambda b, i, j: (b, i, 0)),
            pl.BlockSpec((1, 3, tn), lambda b, i, j: (b, 0, j)),
        ],
        out_specs=pl.BlockSpec((1, tm, tn), lambda b, i, j: (b, i, j)),
        compiler_params=pltpu.CompilerParams(
            dimension_semantics=("parallel", "parallel", "parallel"),
            vmem_limit_bytes=cfg["vmem_limit"]),
        cost_estimate=pl.CostEstimate(
            flops=10 * B * m_pad * n_pad, transcendentals=0,
            bytes_accessed=4 * (B * m_pad * 3 + B * n_pad * 3
                                + B * m_pad * n_pad)),
    )(p1, p2t)
    return out[:, :M, :N]


# ---------------------------------------------------------------------------
# Pallas kernel 2: one backbone layer pass
#   h = relu(x * scale + shift)     (folded BN+ReLU of the PREVIOUS layer)
#   z = h_bf16 @ W_bf16             (MXU, f32 accumulation)
#   per-tile partial sum / sum-of-squares of z (f32) for this layer's BN stats
#   z stored in bf16 (halves HBM round-trip of the memory-bound pass)
# ---------------------------------------------------------------------------
def _layer_kernel(x_ref, scale_ref, shift_ref, w_ref, z_ref, stats_ref,
                  *, apply_affine):
    x = x_ref[...].astype(jnp.float32)                        # (TILE_R, C_prev)
    if apply_affine:
        h = jnp.maximum(x * scale_ref[...] + shift_ref[...], 0.0)
    else:
        h = x
    z = jnp.dot(h.astype(jnp.bfloat16), w_ref[...],           # bf16 MXU operands
                preferred_element_type=jnp.float32)           # (TILE_R, C_out) f32
    s = jnp.sum(z, axis=0, keepdims=True)                     # (1, C_out)
    ss = jnp.sum(z * z, axis=0, keepdims=True)                 # (1, C_out)
    stats_ref[...] = jnp.concatenate([s, ss], axis=0).reshape(1, 2, -1)
    z_ref[...] = z.astype(z_ref.dtype)                         # bf16 store


def _layer_pass(x, scale, shift, w, *, apply_affine, tile_r, cfg):
    r_pad, c_prev = x.shape
    c_out = w.shape[1]
    nt = r_pad // tile_r
    kern = functools.partial(_layer_kernel, apply_affine=apply_affine)
    bytes_accessed = (x.size * x.dtype.itemsize + r_pad * c_out * 2
                      + c_prev * c_out * 2 + nt * 2 * c_out * 4)
    return pl.pallas_call(
        kern,
        out_shape=(jax.ShapeDtypeStruct((r_pad, c_out), jnp.bfloat16),
                   jax.ShapeDtypeStruct((nt, 2, c_out), jnp.float32)),
        grid=(nt,),
        in_specs=[
            pl.BlockSpec((tile_r, c_prev), lambda i: (i, 0)),
            pl.BlockSpec((1, c_prev), lambda i: (0, 0)),
            pl.BlockSpec((1, c_prev), lambda i: (0, 0)),
            pl.BlockSpec((c_prev, c_out), lambda i: (0, 0)),
        ],
        out_specs=(
            pl.BlockSpec((tile_r, c_out), lambda i: (i, 0)),
            pl.BlockSpec((1, 2, c_out), lambda i: (i, 0, 0)),
        ),
        compiler_params=pltpu.CompilerParams(
            dimension_semantics=("parallel",),
            vmem_limit_bytes=cfg["vmem_limit"]),
        cost_estimate=pl.CostEstimate(
            flops=2 * r_pad * c_prev * c_out + 8 * r_pad * (c_prev + c_out),
            transcendentals=0, bytes_accessed=int(bytes_accessed)),
    )(x, scale, shift, w)


# ---------------------------------------------------------------------------
# Pallas kernel 3: final folded-BN + ReLU + max-pool over the K neighbours.
# Input is the bf16 last-layer activation; output channels are 128-padded so
# the pooled store is lane-dense and unmasked.
# ---------------------------------------------------------------------------
def _pool_kernel(z_ref, scale_ref, shift_ref, o_ref, *, k, tile_g):
    h = jnp.maximum(z_ref[...].astype(jnp.float32) * scale_ref[...]
                    + shift_ref[...], 0.0)
    # Rows are (g, k)-major; K a multiple of 8 keeps this reshape a free view.
    h = h.reshape(tile_g, k, h.shape[-1])
    o_ref[...] = jnp.max(h, axis=1)


def _pool_pass(z, scale, shift, *, k, tile_g, cfg):
    r_pad, c_out = z.shape
    g_pad = r_pad // k
    nt = g_pad // tile_g
    kern = functools.partial(_pool_kernel, k=k, tile_g=tile_g)
    return pl.pallas_call(
        kern,
        out_shape=jax.ShapeDtypeStruct((g_pad, c_out), jnp.float32),
        grid=(nt,),
        in_specs=[
            pl.BlockSpec((tile_g * k, c_out), lambda i: (i, 0)),
            pl.BlockSpec((1, c_out), lambda i: (0, 0)),
            pl.BlockSpec((1, c_out), lambda i: (0, 0)),
        ],
        out_specs=pl.BlockSpec((tile_g, c_out), lambda i: (i, 0)),
        compiler_params=pltpu.CompilerParams(
            dimension_semantics=("parallel",),
            vmem_limit_bytes=cfg["vmem_limit"]),
        cost_estimate=pl.CostEstimate(
            flops=4 * r_pad * c_out, transcendentals=0,
            bytes_accessed=2 * r_pad * c_out + 4 * g_pad * c_out),
    )(z, scale, shift)


def _choose_tiles(G, K, cfg):
    """Pick pool-group tile and (decoupled) layer row tile; r_pad is a common
    multiple of both so both grids divide evenly."""
    tile_g = max(8, (cfg["pool_rows"] // max(K, 1)) // 8 * 8)
    tile_g = min(tile_g, _round_up(G, 8))
    tile_gk = tile_g * K
    total_gk = _round_up(G * K, tile_gk)
    mult = max(1, min(cfg["layer_rows"] // tile_gk, total_gk // tile_gk))
    tile_r = mult * tile_gk
    r_pad = _round_up(G * K, tile_r)
    return tile_g, tile_r, r_pad


# ---------------------------------------------------------------------------
# Plain-JAX glue reproducing ball_query / gather_points / sample_and_group.
# (Data-dependent sort + gather have no clean Pallas equivalent; the distance
#  + radius-threshold computation inside ball_query IS the Pallas kernel.)
# ---------------------------------------------------------------------------
def ball_query_jax(xyz, new_xyz, radius, K):
    B, N, _ = xyz.shape
    inds = get_ball_indices_pallas(new_xyz, xyz, radius)          # (B, M, N) i32
    inds = jnp.sort(inds, axis=-1)[:, :, :K]
    min_inds = inds[:, :, 0:1]
    inds = jnp.where(inds == N, min_inds, inds)
    return inds


def gather_points_jax(points, inds):
    B = points.shape[0]
    batch = jnp.arange(B, dtype=jnp.int32).reshape((B,) + (1,) * (inds.ndim - 1))
    return points[batch, inds, :]


def sample_and_group_jax(xyz, points, new_xyz, radius, K, use_xyz=True):
    grouped_inds = ball_query_jax(xyz, new_xyz, radius, K)
    grouped_xyz = gather_points_jax(xyz, grouped_inds)
    if points is not None:
        grouped_points = gather_points_jax(points, grouped_inds)
        if use_xyz:
            new_points = jnp.concatenate(
                [grouped_xyz.astype(jnp.float32),
                 grouped_points.astype(jnp.float32)], axis=-1)
        else:
            new_points = grouped_points
    else:
        new_points = grouped_xyz
    return new_xyz, new_points, grouped_inds, grouped_xyz


def sample_and_group_all_jax(xyz, points, use_xyz=True):
    B, M, C = xyz.shape
    new_xyz = jnp.zeros((B, 1, C), jnp.float32)
    grouped_inds = jnp.broadcast_to(jnp.arange(M, dtype=jnp.int32), (B, 1, M))
    grouped_xyz = xyz.reshape(B, 1, M, C)
    if points is not None:
        if use_xyz:
            new_points = jnp.concatenate(
                [xyz.astype(jnp.float32), points.astype(jnp.float32)], axis=2)
        else:
            new_points = points
        new_points = new_points[:, None, :, :]
    else:
        new_points = grouped_xyz
    return new_xyz, new_points, grouped_inds, grouped_xyz


# ---------------------------------------------------------------------------
# Module wrapper
# ---------------------------------------------------------------------------
class PointNetSAModulePallas:
    def __init__(self, radius, K, in_channels, mlp, group_all,
                 bn=True, use_xyz=True, *, key):
        self.radius = float(radius)
        self.K = K
        self.mlp = list(mlp)
        self.group_all = group_all
        self.bn = bn
        self.use_xyz = use_xyz

        self.c_in = in_channels
        self.c_in_pad = _round_up(in_channels, 8)     # pad ragged C_in (7 -> 8)

        # Deterministic synthetic parameters (no checkpoint).  Weights are
        # stored channel-padded and pre-cast to bf16 (MXU operand dtype).
        # Output channels are padded to 128 (lane-dense stores) whenever the
        # true channel count is >= 64, and always for the final layer (the
        # pooled output store must be lane-dense); small counts pad to 8.
        self.layers = []
        keys = jax.random.split(key, 3 * len(mlp))
        cp_prev, c_prev = self.c_in_pad, in_channels
        for i, out_c in enumerate(mlp):
            lane_dense = (i == len(mlp) - 1) or (out_c >= 64)
            cp_out = _round_up(out_c, 128) if lane_dense else _round_up(out_c, 8)
            w = (jax.random.normal(keys[3 * i], (c_prev, out_c), jnp.float32)
                 * (1.0 / float(c_prev) ** 0.5))
            w_pad = jnp.zeros((cp_prev, cp_out), jnp.float32).at[:c_prev, :out_c].set(w)
            gamma = jnp.ones((1, cp_out), jnp.float32)
            beta = jnp.zeros((1, cp_out), jnp.float32)
            if bn:
                gamma = gamma.at[0, :out_c].set(
                    1.0 + 0.1 * jax.random.normal(keys[3 * i + 1], (out_c,), jnp.float32))
                beta = beta.at[0, :out_c].set(
                    0.05 * jax.random.normal(keys[3 * i + 2], (out_c,), jnp.float32))
            self.layers.append((w_pad.astype(jnp.bfloat16), gamma, beta))
            cp_prev, c_prev = cp_out, out_c
        self.c_out_pad = cp_prev

    def __call__(self, xyz, points, new_xyz):
        if self.group_all:
            new_xyz, new_points, _, _ = sample_and_group_all_jax(
                xyz, points, self.use_xyz)
        else:
            new_xyz, new_points, _, _ = sample_and_group_jax(
                xyz, points, new_xyz, self.radius, self.K, self.use_xyz)

        B, M, K, C = new_points.shape
        G = B * M
        cfg = _hw_config()
        tile_g, tile_r, r_pad = _choose_tiles(G, K, cfg)
        r_valid = G * K                      # BN position count (B*K*M), exact
        pad_rows = r_pad - r_valid

        # (b, m, k)-major rows with channels in lanes -- the natural memory
        # order of the gathered tensor, so no transpose; channel padding is
        # appended in the same concatenation.
        feats = [new_points.astype(jnp.float32)]
        if self.c_in_pad > C:
            feats.append(jnp.zeros((B, M, K, self.c_in_pad - C), jnp.float32))
        x = jnp.concatenate(feats, axis=-1).reshape(r_valid, self.c_in_pad)
        if pad_rows:
            x = jnp.concatenate(
                [x, jnp.zeros((pad_rows, self.c_in_pad), jnp.float32)], axis=0)

        cur = x
        scale = jnp.ones((1, self.c_in_pad), jnp.float32)
        shift = jnp.zeros((1, self.c_in_pad), jnp.float32)
        pad_in = jnp.zeros((1, self.c_in_pad), jnp.float32)  # padded-row value
        for i, (w, gamma, beta) in enumerate(self.layers):
            cur, stats = _layer_pass(cur, scale, shift, w,
                                     apply_affine=(i > 0), tile_r=tile_r, cfg=cfg)
            sums = jnp.sum(stats, axis=0)                       # (2, C_out) tiny
            if pad_rows:
                # Padded rows are not masked in the kernel; remove their
                # (constant-row) contribution from the batch stats analytically.
                h_pad = (jnp.maximum(pad_in * scale + shift, 0.0)
                         if i > 0 else pad_in)
                z_pad = jnp.dot(h_pad.astype(jnp.bfloat16), w,
                                preferred_element_type=jnp.float32)  # (1, C_out)
                sums = sums - float(pad_rows) * jnp.concatenate(
                    [z_pad, z_pad * z_pad], axis=0)
                pad_in = z_pad.astype(jnp.bfloat16).astype(jnp.float32)
            mu = sums[0] / float(r_valid)
            var = jnp.maximum(sums[1] / float(r_valid) - mu * mu, 0.0)
            if self.bn:
                s = gamma[0] * jax.lax.rsqrt(var + _BN_EPS)
                t = beta[0] - mu * s
            else:
                s = jnp.ones_like(mu)
                t = jnp.zeros_like(mu)
            scale = s.reshape(1, -1)
            shift = t.reshape(1, -1)

        # TODO(synk): the `Pool([[4,128],[2,64],[1,32]])` class is not defined
        # in the reference source; the standard PointNet max-pool over the K
        # (neighbour) axis is implemented instead.
        pooled = _pool_pass(cur, scale, shift, k=K, tile_g=tile_g, cfg=cfg)
        out = pooled[:G, :self.mlp[-1]].reshape(B, M, self.mlp[-1])
        return new_xyz, out


# ---------------------------------------------------------------------------
if __name__ == "__main__":
    key = jax.random.PRNGKey(0)
    k_xyz, k_pts, k_par = jax.random.split(key, 3)

    B, N, M, K = 2, 16, 8, 8
    C_feat = 4
    radius = 0.8

    xyz = jax.random.uniform(k_xyz, (B, N, 3), dtype=jnp.float32)
    points = jax.random.normal(k_pts, (B, N, C_feat), dtype=jnp.float32)
    new_xyz = xyz[:, :M, :]   # centroids: first M points (deterministic)

    # Sanity-check the fused ball-query index kernel against plain JAX
    # (same ||a||^2+||b||^2-2ab expansion as the PyTorch reference).
    inds = ball_query_jax(xyz, new_xyz, radius, K)
    sq_ref = (jnp.sum(new_xyz ** 2, -1)[:, :, None]
              + jnp.sum(xyz ** 2, -1)[:, None, :]
              - 2.0 * jnp.einsum("bmc,bnc->bmn", new_xyz, xyz))
    base = jnp.broadcast_to(jnp.arange(N, dtype=jnp.int32), (B, M, N))
    inds_ref = jnp.where(sq_ref > radius ** 2, jnp.int32(N), base)
    inds_ref = jnp.sort(inds_ref, axis=-1)[:, :, :K]
    inds_ref = jnp.where(inds_ref == N, inds_ref[:, :, 0:1], inds_ref)
    assert bool(jnp.array_equal(inds, inds_ref))

    module = PointNetSAModulePallas(
        radius=radius, K=K, in_channels=3 + C_feat, mlp=[16, 32],
        group_all=False, bn=True, use_xyz=True, key=k_par)

    fwd = jax.jit(lambda a, b, c: module(a, b, c))
    out_xyz, out_points = fwd(xyz, points, new_xyz)
    jax.block_until_ready((out_xyz, out_points))

    assert out_xyz.shape == (B, M, 3)
    assert out_points.shape == (B, M, 32)
    assert bool(jnp.all(jnp.isfinite(out_points)))
    print("KERNEL_OK")
</pallas_src>

<mosaic_0001>
module attributes {stable_mosaic.version = 11 : i64} {
  func.func @_ball_idx_kernel(%arg0: i32, %arg1: i32, %arg2: i32, %arg3: memref<1x8x3xf32, #tpu.memory_space<vmem>>, %arg4: memref<1x3x128xf32, #tpu.memory_space<vmem>>, %arg5: memref<1x8x128xi32, #tpu.memory_space<vmem>>) attributes {dimension_semantics = [#tpu.dimension_semantics<parallel>, #tpu.dimension_semantics<parallel>, #tpu.dimension_semantics<parallel>], iteration_bounds = array<i64: 2, 1, 1>, scalar_prefetch = 0 : i64, scratch_operands = 0 : i64, tpu.core_type = #tpu.core_type<tc>, window_params = [{transform_indices = @transform_0, window_bounds = array<i64: 1, 8, 3>}, {transform_indices = @transform_1, window_bounds = array<i64: 1, 3, 128>}, {transform_indices = @transform_2, window_bounds = array<i64: 1, 8, 128>}]} {
    %c0 = arith.constant 0 : index
    %c0_0 = arith.constant 0 : index
    %c0_1 = arith.constant 0 : index
    %0 = vector.load %arg3[%c0, %c0_0, %c0_1] : memref<1x8x3xf32, #tpu.memory_space<vmem>>, vector<1x8x3xf32>
    %c0_2 = arith.constant 0 : index
    %c0_3 = arith.constant 0 : index
    %c0_4 = arith.constant 0 : index
    %1 = vector.load %arg4[%c0_2, %c0_3, %c0_4] : memref<1x3x128xf32, #tpu.memory_space<vmem>>, vector<1x3x128xf32>
    %2 = vector.extract_strided_slice %0 {offsets = [0, 0, 0], sizes = [1, 8, 1], strides = [1, 1, 1]} : vector<1x8x3xf32> to vector<1x8x1xf32>
    %3 = vector.extract_strided_slice %0 {offsets = [0, 0, 1], sizes = [1, 8, 1], strides = [1, 1, 1]} : vector<1x8x3xf32> to vector<1x8x1xf32>
    %4 = vector.extract_strided_slice %0 {offsets = [0, 0, 2], sizes = [1, 8, 1], strides = [1, 1, 1]} : vector<1x8x3xf32> to vector<1x8x1xf32>
    %5 = vector.extract_strided_slice %1 {offsets = [0, 0, 0], sizes = [1, 1, 128], strides = [1, 1, 1]} : vector<1x3x128xf32> to vector<1x1x128xf32>
    %6 = vector.extract_strided_slice %1 {offsets = [0, 1, 0], sizes = [1, 1, 128], strides = [1, 1, 1]} : vector<1x3x128xf32> to vector<1x1x128xf32>
    %7 = vector.extract_strided_slice %1 {offsets = [0, 2, 0], sizes = [1, 1, 128], strides = [1, 1, 1]} : vector<1x3x128xf32> to vector<1x1x128xf32>
    %8 = arith.mulf %2, %2 : vector<1x8x1xf32>
    %9 = arith.mulf %3, %3 : vector<1x8x1xf32>
    %10 = arith.addf %8, %9 : vector<1x8x1xf32>
    %11 = arith.mulf %4, %4 : vector<1x8x1xf32>
    %12 = arith.addf %10, %11 : vector<1x8x1xf32>
    %13 = arith.mulf %5, %5 : vector<1x1x128xf32>
    %14 = arith.mulf %6, %6 : vector<1x1x128xf32>
    %15 = arith.addf %13, %14 : vector<1x1x128xf32>
    %16 = arith.mulf %7, %7 : vector<1x1x128xf32>
    %17 = arith.addf %15, %16 : vector<1x1x128xf32>
    %18 = vector.broadcast %2 : vector<1x8x1xf32> to vector<1x8x128xf32>
    %19 = vector.broadcast %5 : vector<1x1x128xf32> to vector<1x8x128xf32>
    %20 = arith.mulf %18, %19 : vector<1x8x128xf32>
    %21 = vector.broadcast %3 : vector<1x8x1xf32> to vector<1x8x128xf32>
    %22 = vector.broadcast %6 : vector<1x1x128xf32> to vector<1x8x128xf32>
    %23 = arith.mulf %21, %22 : vector<1x8x128xf32>
    %24 = arith.addf %20, %23 : vector<1x8x128xf32>
    %25 = vector.broadcast %4 : vector<1x8x1xf32> to vector<1x8x128xf32>
    %26 = vector.broadcast %7 : vector<1x1x128xf32> to vector<1x8x128xf32>
    %27 = arith.mulf %25, %26 : vector<1x8x128xf32>
    %28 = arith.addf %24, %27 : vector<1x8x128xf32>
    %29 = vector.broadcast %12 : vector<1x8x1xf32> to vector<1x8x128xf32>
    %30 = vector.broadcast %17 : vector<1x1x128xf32> to vector<1x8x128xf32>
    %31 = arith.addf %29, %30 : vector<1x8x128xf32>
    %cst = arith.constant 2.000000e+00 : f32
    %32 = vector.broadcast %cst : f32 to vector<1x8x128xf32>
    %33 = arith.mulf %32, %28 : vector<1x8x128xf32>
    %34 = arith.subf %31, %33 : vector<1x8x128xf32>
    %35 = tpu.iota {dimensions = array<i32: 2>} : vector<1x8x128xi32>
    %c128_i32 = arith.constant 128 : i32
    %36 = arith.muli %arg2, %c128_i32 : i32
    %37 = vector.broadcast %36 : i32 to vector<1x8x128xi32>
    %38 = arith.addi %35, %37 : vector<1x8x128xi32>
    %cst_5 = arith.constant 6.400000e-01 : f32
    %39 = vector.broadcast %cst_5 : f32 to vector<1x8x128xf32>
    %40 = arith.cmpf ogt, %34, %39 : vector<1x8x128xf32>
    %c16_i32 = arith.constant 16 : i32
    %41 = vector.broadcast %c16_i32 : i32 to vector<1x8x128xi32>
    %42 = arith.cmpi sge, %38, %41 : vector<1x8x128xi32>
    %43 = arith.ori %40, %42 : vector<1x8x128xi1>
    %c16_i32_6 = arith.constant 16 : i32
    %44 = vector.broadcast %c16_i32_6 : i32 to vector<1x8x128xi32>
    %45 = arith.select %43, %44, %38 : vector<1x8x128xi1>, vector<1x8x128xi32>
    %c0_7 = arith.constant 0 : index
    %c0_8 = arith.constant 0 : index
    %c0_9 = arith.constant 0 : index
    %46 = vector.load %arg5[%c0_7, %c0_8, %c0_9] : memref<1x8x128xi32, #tpu.memory_space<vmem>>, vector<1x8x128xi32>
    tpu.vector_store %arg5[%c0_7, %c0_8, %c0_9], %45 {strides = array<i32>} : memref<1x8x128xi32, #tpu.memory_space<vmem>>, vector<1x8x128xi32>,
    return
  }
  func.func @transform_0(%arg0: i32, %arg1: i32, %arg2: i32) -> (i32, i32, i32) {
    %c0_i32 = arith.constant 0 : i32
    %c0_i32_0 = arith.constant 0 : i32
    return %arg0, %arg1, %c0_i32 : i32, i32, i32
  }
  func.func @transform_1(%arg0: i32, %arg1: i32, %arg2: i32) -> (i32, i32, i32) {
    %c0_i32 = arith.constant 0 : i32
    %c0_i32_0 = arith.constant 0 : i32
    return %arg0, %c0_i32, %arg2 : i32, i32, i32
  }
  func.func @transform_2(%arg0: i32, %arg1: i32, %arg2: i32) -> (i32, i32, i32) {
    %c0_i32 = arith.constant 0 : i32
    return %arg0, %arg1, %arg2 : i32, i32, i32
  }
}

</mosaic_0001>

<llo_original>
// kernel: tpu_custom_call.1
$region0: #{tpu_custom_call.1}
  #allocation0 [shape = 'u32[]', space=smem, size = 0x4, offset = 0x4, fixed_abs, tag = 'smem constant byte address 0x4 - core index']
  #allocation1 [shape = 'u32[144,128]{1,0:T(1,128)}', space=vmem, size = 0x12000, scoped, tag = 'internal scratch']
  %s0 = inlined_call_operand.vmem [shape: f32[2,8,3], index: 0, kind: input, shape index: {}]
  %s1 = inlined_call_operand.vmem [shape: f32[2,3,128], index: 1, kind: input, shape index: {}]
  %s2 = inlined_call_operand.hbm [shape: s32[2,8,128], index: 2, kind: output, shape index: {}]
  %s3 = sld [smem:[#allocation0]]
  $region41: #{tpu_custom_call.1} parent=0
    _
  %s5 = ssub.s32 1, %s3
  %s6 = scalar_select 0, %s5, %s3
  $region1: #{tpu_custom_call.1} parent=0
    #allocation2 [shape = 'u8[8192]{0}', space=vmem, size = 0x2000, scoped, tag = 'output window, operand 0']
    #allocation3 [shape = 's32[2]{0}', space=sflag, size = 0x8, scoped, tag = 'scoped memory for tpu_custom_call.1']
    %7 = vsyncpa [#allocation3], 0
    %s8 = scalar_lea.sflag [#allocation3], 1
    %9 = vsyncpa %s8, 0
    loop: start=0, step=1, limit=4
    $region2: #{tpu_custom_call.1} parent=1 // loop_pre_header
      _
    $region3: #{tpu_custom_call.1} parent=1 // loop_header
      %s11 = sphi 0, %s15
      %p12 = scmp.ge.s32.totalorder %s11, 4
      %s18 = sphi 0, %s37
      %s19 = sphi 0, %s33
      %s20 = sphi 0, %s29
      %s21 = sphi 0, %s18
      %s22 = sphi 0, %s19
      %s23 = sphi 0, %s20
      %s24 = sphi 0, %s21
      %s25 = sphi 0, %s22
      %s26 = sphi 0, %s23
      %s42 = sphi 0, %s44
      %s45 = sphi 0, %s42
      %s46 = sphi 0, %s45
      %s62 = sphi 0, %s46
      %s70 = sphi 0, %s72
      %s73 = sphi 0, %s70
      %s74 = sphi 0, %s73
      %s90 = sphi 0, %s74
      %s100 = sphi 0, %s102
      %s103 = sphi 0, %s100
      %s104 = sphi 0, %s103
      %s120 = sphi 0, %s104
    $region4: #{tpu_custom_call.1} parent=1 // loop_header_branch
      %14 = sbr.rel (%p12) target = $region8
    $region5: #{tpu_custom_call.1} parent=1 // loop_body
      %s16 = ssub.s32 %s11, 1
      %s17 = ssub.s32 %s11, 2
      %s27 = sadd.s32 1, %s20
      %p28 = scmp.ge.s32.totalorder %s27, 1
      %s29 = scalar_select %p28, 0, %s27
      %s30 = sadd.s32 1, %s19
      %s31 = scalar_select %p28, %s30, %s19
      %p32 = scmp.ge.s32.totalorder %s31, 1
      %s33 = scalar_select %p32, 0, %s31
      %s34 = sadd.s32 1, %s18
      %s35 = scalar_select %p32, %s34, %s18
      %p36 = scmp.ge.s32.totalorder %s35, 2
      %s37 = scalar_select %p36, 0, %s35
      %s38 = ssub.s32 %s18, %s37
      %s39 = ssub.s32 %s19, %s33
      %s40 = sor.u32 %s38, %s39
      %p41 = scmp.eq.s32.totalorder %s40, 0
      %s43 = sadd.s32 %s42, 1
      %s44 = scalar_select %p41, %s42, %s43
      %p47 = pneg %p41
      %p48 = scmp.eq.s32.totalorder %s11, 1
      %p49 = por %p47, %p48
      %p50 = scmp.ne.s32.totalorder %s42, %s45
      %p51 = scmp.eq.s32.totalorder %s11, 0
      %p52 = por %p50, %p51
      %p53 = scmp.ne.s32.totalorder %s42, %s45
      %p54 = scmp.eq.s32.totalorder %s16, 1
      %p55 = por %p53, %p54
      %p56 = scmp.ne.s32.totalorder %s45, %s46
      %p57 = scmp.eq.s32.totalorder %s16, 0
      %p58 = por %p56, %p57
      %p59 = scmp.ne.s32.totalorder %s45, %s46
      %p60 = scmp.eq.s32.totalorder %s17, 1
      %p61 = por %p59, %p60
      %p63 = scmp.ne.s32.totalorder %s46, %s62
      %p64 = scmp.eq.s32.totalorder %s17, 0
      %p65 = por %p63, %p64
      %s66 = ssub.s32 %s18, %s37
      %s67 = ssub.s32 %s20, %s29
      %s68 = sor.u32 %s66, %s67
      %p69 = scmp.eq.s32.totalorder %s68, 0
      %s71 = sadd.s32 %s70, 1
      %s72 = scalar_select %p69, %s70, %s71
      %p75 = pneg %p69
      %p76 = scmp.eq.s32.totalorder %s11, 1
      %p77 = por %p75, %p76
      %p78 = scmp.ne.s32.totalorder %s70, %s73
      %p79 = scmp.eq.s32.totalorder %s11, 0
      %p80 = por %p78, %p79
      %p81 = scmp.ne.s32.totalorder %s70, %s73
      %p82 = scmp.eq.s32.totalorder %s16, 1
      %p83 = por %p81, %p82
      %p84 = scmp.ne.s32.totalorder %s73, %s74
      %p85 = scmp.eq.s32.totalorder %s16, 0
      %p86 = por %p84, %p85
      %p87 = scmp.ne.s32.totalorder %s73, %s74
      %p88 = scmp.eq.s32.totalorder %s17, 1
      %p89 = por %p87, %p88
      %p91 = scmp.ne.s32.totalorder %s74, %s90
      %p92 = scmp.eq.s32.totalorder %s17, 0
      %p93 = por %p91, %p92
      %s94 = ssub.s32 %s18, %s37
      %s95 = ssub.s32 %s19, %s33
      %s96 = sor.u32 %s94, %s95
      %s97 = ssub.s32 %s20, %s29
      %s98 = sor.u32 %s96, %s97
      %p99 = scmp.eq.s32.totalorder %s98, 0
      %s101 = sadd.s32 %s100, 1
      %s102 = scalar_select %p99, %s100, %s101
      %p105 = pneg %p99
      %p106 = scmp.eq.s32.totalorder %s11, 1
      %p107 = por %p105, %p106
      %p108 = scmp.ne.s32.totalorder %s100, %s103
      %p109 = scmp.eq.s32.totalorder %s11, 0
      %p110 = por %p108, %p109
      %p111 = scmp.ne.s32.totalorder %s100, %s103
      %p112 = scmp.eq.s32.totalorder %s16, 1
      %p113 = por %p111, %p112
      %p114 = scmp.ne.s32.totalorder %s103, %s104
      %p115 = scmp.eq.s32.totalorder %s16, 0
      %p116 = por %p114, %p115
      %p117 = scmp.ne.s32.totalorder %s103, %s104
      %p118 = scmp.eq.s32.totalorder %s17, 1
      %p119 = por %p117, %p118
      %p121 = scmp.ne.s32.totalorder %s104, %s120
      %p122 = scmp.eq.s32.totalorder %s17, 0
      %p123 = por %p121, %p122
      %p124 = scmp.le.s32.totalorder 1, %s11
      %p125 = scmp.lt.s32.totalorder %s11, 3
      %p126 = pnand %p124, %p125
      %p127 = pneg %p126
      // Predicated region
      $region9: #{tpu_custom_call.1} parent=5 // pred_check
        _
      $region10: #{tpu_custom_call.1} parent=5 // pred_check_branch
        %129 = sbr.rel (%p126) target = $region12
      $region11: #{tpu_custom_call.1} parent=5 // pred_region
        %s130 = ssub.s32 %s11, 1
      $region12: #{tpu_custom_call.1} parent=5 // pred_fallthru
        _
      %p131 = scmp.lt.s32.totalorder %s11, 2
      // Predicated region
      $region13: #{tpu_custom_call.1} parent=5 // pred_check
        %p132 = pneg %p131
      $region14: #{tpu_custom_call.1} parent=5 // pred_check_branch
        %134 = sbr.rel (%p132) target = $region16
      $region15: #{tpu_custom_call.1} parent=5 // pred_region
        // Predicated region
        $region17: #{tpu_custom_call.1} parent=15 // pred_check
          %p135 = pneg %p52
        $region18: #{tpu_custom_call.1} parent=15 // pred_check_branch
          %137 = sbr.rel (%p135) target = $region20
        $region19: #{tpu_custom_call.1} parent=15 // pred_region
          %p138 = scmp.lt.s32.totalorder %s18, 1
          %s139 = scalar_select %p138, %s18, 1
          %p140 = scmp.lt.s32.totalorder %s19, 0
          %s141 = scalar_select %p140, %s19, 0
          %s142 = sadd.s32 %s141, %s139
          %s143 = smul.addr %s142, 8
          %s144 = scalar_lea.vmem %s0, %s143
        $region20: #{tpu_custom_call.1} parent=15 // pred_fallthru
          _
        // Predicated region
        $region21: #{tpu_custom_call.1} parent=15 // pred_check
          %p145 = pneg %p80
        $region22: #{tpu_custom_call.1} parent=15 // pred_check_branch
          %147 = sbr.rel (%p145) target = $region24
        $region23: #{tpu_custom_call.1} parent=15 // pred_region
          %p148 = scmp.lt.s32.totalorder %s18, 1
          %s149 = scalar_select %p148, %s18, 1
          %p150 = scmp.lt.s32.totalorder %s20, 0
          %s151 = scalar_select %p150, %s20, 0
          %s152 = sadd.s32 %s151, %s149
          %s153 = smul.addr %s152, 4
          %s154 = scalar_lea.vmem %s1, %s153
        $region24: #{tpu_custom_call.1} parent=15 // pred_fallthru
          _
      $region16: #{tpu_custom_call.1} parent=5 // pred_fallthru
        _
      %p155 = scmp.le.s32.totalorder 1, %s11
      %p156 = scmp.lt.s32.totalorder %s11, 3
      %p157 = pnand %p155, %p156
      %p158 = pneg %p157
      // Predicated region
      $region25: #{tpu_custom_call.1} parent=5 // pred_check
        _
      $region26: #{tpu_custom_call.1} parent=5 // pred_check_branch
        %160 = sbr.rel (%p157) target = $region28
      $region27: #{tpu_custom_call.1} parent=5 // pred_region
        %s161 = ssub.s32 %s11, 1
        %p162 = scmp.lt.s32.totalorder %s21, 1
        %s163 = scalar_select %p162, %s21, 1
        %p164 = scmp.lt.s32.totalorder %s22, 0
        %s165 = scalar_select %p164, %s22, 0
        %s166 = sadd.s32 %s165, %s163
        %s167 = smul.addr %s166, 8
        %s168 = scalar_lea.vmem %s0, %s167
        %p169 = pneg %p58
        %p170 = pneg %p55
        %p171 = scmp.lt.s32.totalorder %s21, 1
        %s172 = scalar_select %p171, %s21, 1
        %p173 = scmp.lt.s32.totalorder %s23, 0
        %s174 = scalar_select %p173, %s23, 0
        %s175 = sadd.s32 %s174, %s172
        %s176 = smul.addr %s175, 4
        %s177 = scalar_lea.vmem %s1, %s176
        %p178 = pneg %p86
        %p179 = pneg %p83
        %p180 = pneg %p116
        %p181 = pneg %p113
        %s182 = sand.u32 %s103, 1
        %s183 = scalar_lea.sflag [#allocation3], %s182
        %s184 = sand.u32 %s103, 1
        %s185 = smul.addr %s184, 8
        %s186 = scalar_lea.vmem [#allocation2], %s185
        %p187 = scmp.lt.s32.totalorder %s21, 1
        %s188 = scalar_select %p187, %s21, 1
        %p189 = scmp.lt.s32.totalorder %s22, 0
        %s190 = scalar_select %p189, %s22, 0
        %s191 = sadd.s32 %s190, %s188
        %s192 = smul.addr %s191, 8
        %s193 = scalar_lea.vmem %s0, %s192
        %p194 = scmp.lt.s32.totalorder %s21, 1
        %s195 = scalar_select %p194, %s21, 1
        %p196 = scmp.lt.s32.totalorder %s23, 0
        %s197 = scalar_select %p196, %s23, 0
        %s198 = sadd.s32 %s197, %s195
        %s199 = smul.addr %s198, 4
        %s200 = scalar_lea.vmem %s1, %s199
        %v201 = vld [vmem:[%s193] sm:$0xff]
        %v202 = vld [vmem:[%s200] sm:$0x7]
        %v203 = vmul.f32 %v201, %v201
        %205 = vrot.lane.b32.xlu0 %v203, 127
        %v206 = vpop.permute.xlu0 %205
        %v208 = vadd.f32 %v203, %v206
        %209 = vrot.lane.b32.xlu0 %v203, 126
        %v210 = vpop.permute.xlu0 %209
        %v212 = vadd.f32 %v208, %v210
        %v213 = vmul.f32 %v202, %v202
        %v215 = vrot.slane %v213, 1
        %v217 = vadd.f32 %v213, %v215
        %v218 = vrot.slane %v213, 2
        %v220 = vadd.f32 %v217, %v218
        %222 = vset.pattern.permute.xlu0 0
        %223 = vperm.xlu0 %222, %v201
        %v224 = vpop.permute.xlu0 %223
        %v226 = vlaneseq
        %v227 = vshrl.u32 %v226, 7
        %v228 = vsub.s32 0, %v227
        %v229 = vrot.slane %v202, %v228
        %v230 = vmul.f32 %v224, %v229
        %231 = vset.pattern.permute.xlu0 1
        %232 = vperm.xlu0 %231, %v201
        %v233 = vpop.permute.xlu0 %232
        %v235 = vlaneseq
        %v236 = vshrl.u32 %v235, 7
        %v237 = vsub.s32 1, %v236
        %v238 = vrot.slane %v202, %v237
        %v239 = vmul.f32 %v233, %v238
        %v240 = vadd.f32 %v230, %v239
        %241 = vset.pattern.permute.xlu0 2
        %242 = vperm.xlu0 %241, %v201
        %v243 = vpop.permute.xlu0 %242
        %v245 = vlaneseq
        %v246 = vshrl.u32 %v245, 7
        %v247 = vsub.s32 2, %v246
        %v248 = vrot.slane %v202, %v247
        %v249 = vmul.f32 %v243, %v248
        %v250 = vadd.f32 %v240, %v249
        %252 = vset.pattern.permute.xlu0 0
        %253 = vperm.xlu0 %252, %v212
        %v254 = vpop.permute.xlu0 %253
        %v256 = vlaneseq
        %v257 = vshrl.u32 %v256, 7
        %v258 = vsub.s32 0, %v257
        %v259 = vrot.slane %v220, %v258
        %v260 = vadd.f32 %v254, %v259
        %v261 = vmul.f32 %v250, 2.0
        %v262 = vsub.f32 %v260, %v261
        %v263 = vlaneseq
        %v264 = vand.u32 %v263, 127
        %s265 = smul.u32 %s23, 128
        %v266 = vstv %s265
        %v267 = vadd.s32 %v264, %v266
        %vm268 = vcmp.gt.f32.partialorder %v262, 0.64
        %vm269 = vcmp.ge.s32.totalorder %v267, 16
        %vm270 = vmor %vm268, %vm269
        %v271 = vsel %vm270, 16, %v267
        %272 = vst [vmem:[%s186] sm:$0xff] %v271
        %s273 = sand.u32 %s103, 1
        %s274 = scalar_lea.sflag [#allocation3], %s273
        %s275 = sand.u32 %s103, 1
        %s276 = smul.addr %s275, 8
        %s277 = scalar_lea.vmem [#allocation2], %s276
        // Predicated region
        $region29: #{tpu_custom_call.1} parent=27 // pred_check
          %p278 = pneg %p113
        $region30: #{tpu_custom_call.1} parent=27 // pred_check_branch
          %280 = sbr.rel (%p278) target = $region32
        $region31: #{tpu_custom_call.1} parent=27 // pred_region
          %s282 = ssub.s32 128, 128
          %283 = vsyncadd %s274, %s282
          %s284 = sadd.s32 %s23, %s22
          %s285 = sadd.s32 %s284, %s21
          %s286 = smul.addr %s285, 128
          %s287 = scalar_lea.hbm %s2, %s286
          %s289 = sshll.u32 %s277, 4
          %s290 = int_to_ptr.vmem [resolvable:$true] %s289
          %292 = dma.vmem_to_hbm [thread:$0]  %s290, 128, %s287, %s274
        $region32: #{tpu_custom_call.1} parent=27 // pred_fallthru
          _
      $region28: #{tpu_custom_call.1} parent=5 // pred_fallthru
        _
      %p293 = scmp.le.s32.totalorder 2, %s11
      // Predicated region
      $region33: #{tpu_custom_call.1} parent=5 // pred_check
        %p294 = pneg %p293
      $region34: #{tpu_custom_call.1} parent=5 // pred_check_branch
        %296 = sbr.rel (%p294) target = $region36
      $region35: #{tpu_custom_call.1} parent=5 // pred_region
        %s297 = ssub.s32 %s11, 2
        // Predicated region
        $region37: #{tpu_custom_call.1} parent=35 // pred_check
          %p298 = pneg %p119
        $region38: #{tpu_custom_call.1} parent=35 // pred_check_branch
          %300 = sbr.rel (%p298) target = $region40
        $region39: #{tpu_custom_call.1} parent=35 // pred_region
          %s301 = sand.u32 %s104, 1
          %s302 = scalar_lea.sflag [#allocation3], %s301
          %s303 = sand.u32 %s104, 1
          %s304 = smul.addr %s303, 8
          %s305 = scalar_lea.vmem [#allocation2], %s304
          %306 = dma.done %s302, 128
        $region40: #{tpu_custom_call.1} parent=35 // pred_fallthru
          _
      $region36: #{tpu_custom_call.1} parent=5 // pred_fallthru
        _
    $region6: #{tpu_custom_call.1} parent=1 // loop_footer
      %s15 = sadd.s32 1, %s11
    $region7: #{tpu_custom_call.1} parent=1 // loop_footer_branch
      %10 = sbr.rel target = $region3
    $region8: #{tpu_custom_call.1} parent=1 // loop_exit
      _
    %307 = vsyncpa [#allocation3], 1
    %s308 = scalar_lea.sflag [#allocation3], 1
    %309 = vsyncpa %s308, 1

</llo_original>
